<compile_context>
chip_gen: v7x
topology: tpu7x:2x2x1
jax: 0.10.0
libtpu: 0.0.40
codegen_flags: <defaults>
</compile_context>

<pallas_src>
import jax
import jax.numpy as jnp
from jax.experimental import pallas as pl
from jax.experimental.pallas import tpu as pltpu


def _round_up(x: int, m: int) -> int:
    return ((x + m - 1) // m) * m


def attention_kernel(enc_ref, hid_ref, w_ref, out_ref):
    # enc_ref: [N1, tn2, E]  encoder_outputs (b, i, e), native layout
    # hid_ref: [K,  tn2, D]  hidden          (k, i, d), native layout
    # w_ref:   [D, E]        nn.Linear weight (torch [out,in] layout), resident
    # out_ref: [K, tn2, N1]  softmax over b of sum_e enc[b,i,e]*(hid@W)[k,i,e]
    k_dim = hid_ref.shape[0]

    w = w_ref[...]
    enc = enc_ref[...].astype(jnp.float32)                 # [b, i, e]

    for k in range(k_dim):                                 # K is tiny & static
        # Fused Linear on the hidden side (bias cancels under softmax over b):
        #   wh[i, e] = sum_d hidden[k, i, d] * W[d, e]      -- MXU, M = tn2 rows
        wh = jnp.dot(hid_ref[k], w, preferred_element_type=jnp.float32)  # [tn2, E]

        # scores[b, i] = sum_e enc[b, i, e] * wh[i, e]      -- VPU mul + lane reduce
        s_bi = jnp.sum(enc * wh[None, :, :], axis=-1)       # [N1, tn2]
        s_ib = jnp.transpose(s_bi, (1, 0))                  # [tn2, N1]  (XLU)

        # softmax over b (last axis, unpadded logical extent -> no masking)
        m = jnp.max(s_ib, axis=-1, keepdims=True)
        ex = jnp.exp(s_ib - m)
        denom = jnp.sum(ex, axis=-1, keepdims=True)
        probs = ex * pl.reciprocal(denom, approx=True)       # EUP reciprocal
        out_ref[k] = probs.astype(out_ref.dtype)


def attention_forward(hidden, encoder_outputs, weight, bias=None, *, block_n2: int = 512):
    """hidden: [K, N2, D], encoder_outputs: [N1, N2, E],
    weight: [D, E] (torch nn.Linear layout), bias: [D] (unused: cancels under
    the softmax over N1)  ->  [K, N2, N1]."""
    n1, n2, e_dim = encoder_outputs.shape
    k_dim, n2_h, d_dim = hidden.shape
    assert n2_h == n2
    assert weight.shape == (d_dim, e_dim)
    del bias  # per-(k, i) constant shift of the scores -> cancels in softmax

    # ---- tile selection: VMEM-budgeted, >=2 grid steps for v7x megacore ----
    try:
        vmem_cap = int(pltpu.get_tpu_info().vmem_capacity_bytes)
    except Exception:
        vmem_cap = 64 * 1024 * 1024            # conservative (v7x-sized) fallback

    def vmem_estimate(t):
        lane = lambda x: _round_up(x, 128)
        enc_blk = n1 * t * lane(e_dim) * 4
        hid_blk = k_dim * t * lane(d_dim) * 4
        out_blk = k_dim * t * lane(n1) * 4
        w_blk = _round_up(d_dim, 8) * lane(e_dim) * 4
        scratch = (n1 * t * lane(e_dim) * 4          # product intermediate
                   + 4 * t * lane(n1) * 4            # scores / exp / probs
                   + t * lane(e_dim) * 4)            # wh
        return 2 * (enc_blk + hid_blk + out_blk + w_blk) + scratch

    tn2 = min(_round_up(max(block_n2, 8), 8), _round_up(n2, 8))
    if n2 >= 16:                                   # allow sharding across 2 TCs
        tn2 = min(tn2, _round_up(pl.cdiv(n2, 2), 8))
    budget = max(16 << 20, int(vmem_cap * 0.45))
    while tn2 > 8 and vmem_estimate(tn2) > budget:
        tn2 = max(8, _round_up(tn2 // 2, 8))
    n2_pad = _round_up(n2, tn2)

    vmem_limit = max(16 << 20,
                     int(min(vmem_cap - (8 << 20),
                             max(vmem_estimate(tn2) + (8 << 20), 32 << 20))))

    # ---- HBM-side prep: only N2 is padded; no transposes, no N1 padding ----
    enc = jnp.pad(encoder_outputs, ((0, 0), (0, n2_pad - n2), (0, 0)))
    hid = jnp.pad(hidden, ((0, 0), (0, n2_pad - n2), (0, 0)))

    grid = (n2_pad // tn2,)
    out = pl.pallas_call(
        attention_kernel,
        out_shape=jax.ShapeDtypeStruct((k_dim, n2_pad, n1), encoder_outputs.dtype),
        grid=grid,
        in_specs=[
            pl.BlockSpec((n1, tn2, e_dim), lambda i: (0, i, 0)),     # enc tile
            pl.BlockSpec((k_dim, tn2, d_dim), lambda i: (0, i, 0)),  # hidden tile
            pl.BlockSpec((d_dim, e_dim), lambda i: (0, 0)),          # W (resident)
        ],
        out_specs=pl.BlockSpec((k_dim, tn2, n1), lambda i: (0, i, 0)),
        compiler_params=pltpu.CompilerParams(
            dimension_semantics=("parallel",),
            vmem_limit_bytes=vmem_limit),
    )(enc, hid, weight)

    return out[:, :n2, :]


if __name__ == "__main__":
    # K = num RNN layers/directions, N1 = src_len, N2 = batch,
    # E = enc_hid_dim, D = dec_hid_dim
    K, N1, N2 = 2, 8, 8
    E, D = 32, 32

    key = jax.random.PRNGKey(0)
    k1, k2, k3, k4 = jax.random.split(key, 4)
    encoder_outputs = jax.random.normal(k1, (N1, N2, E), dtype=jnp.float32)
    hidden = jax.random.normal(k2, (K, N2, D), dtype=jnp.float32)

    # Deterministic nn.Linear(enc_hid_dim, dec_hid_dim) parameters
    # (torch default init: uniform(-1/sqrt(E), 1/sqrt(E))).
    bound = 1.0 / (E ** 0.5)
    weight = jax.random.uniform(k3, (D, E), minval=-bound, maxval=bound, dtype=jnp.float32)
    bias = jax.random.uniform(k4, (D,), minval=-bound, maxval=bound, dtype=jnp.float32)

    out = attention_forward(hidden, encoder_outputs, weight, bias)
    out = jax.block_until_ready(out)

    # Pure-JAX reference (full module semantics, including the bias).
    proj_ref = jnp.einsum('bie,de->bid', encoder_outputs, weight) + bias
    ref = jnp.einsum('bij,kij->kib', proj_ref, hidden)
    ref = jax.nn.softmax(ref, axis=-1)

    assert out.shape == (K, N2, N1), out.shape
    # Tolerance covers the EUP approximate reciprocal and the (exact-in-math)
    # bias cancellation under softmax.
    err = float(jnp.max(jnp.abs(out - ref)))
    assert jnp.allclose(out, ref, atol=2e-3, rtol=2e-3), err
    print("KERNEL_OK")
</pallas_src>

<mosaic_0001>
module attributes {stable_mosaic.version = 11 : i64} {
  func.func @attention_kernel(%arg0: i32, %arg1: memref<8x8x32xf32, #tpu.memory_space<vmem>>, %arg2: memref<2x8x32xf32, #tpu.memory_space<vmem>>, %arg3: memref<32x32xf32, #tpu.memory_space<vmem>>, %arg4: memref<2x8x8xf32, #tpu.memory_space<vmem>>) attributes {dimension_semantics = [#tpu.dimension_semantics<parallel>], iteration_bounds = array<i64: 1>, scalar_prefetch = 0 : i64, scratch_operands = 0 : i64, tpu.core_type = #tpu.core_type<tc>, window_params = [{transform_indices = @transform_0, window_bounds = array<i64: 8, 8, 32>}, {transform_indices = @transform_1, window_bounds = array<i64: 2, 8, 32>}, {pipeline_mode = #tpu.pipeline_mode<synchronous>, transform_indices = @transform_2, window_bounds = array<i64: 32, 32>}, {transform_indices = @transform_3, window_bounds = array<i64: 2, 8, 8>}]} {
    %c0 = arith.constant 0 : index
    %c0_0 = arith.constant 0 : index
    %0 = vector.load %arg3[%c0, %c0_0] : memref<32x32xf32, #tpu.memory_space<vmem>>, vector<32x32xf32>
    %c0_1 = arith.constant 0 : index
    %c0_2 = arith.constant 0 : index
    %c0_3 = arith.constant 0 : index
    %1 = vector.load %arg1[%c0_1, %c0_2, %c0_3] : memref<8x8x32xf32, #tpu.memory_space<vmem>>, vector<8x8x32xf32>
    %c0_4 = arith.constant 0 : index
    %c0_5 = arith.constant 0 : index
    %c0_6 = arith.constant 0 : index
    %2 = vector.load %arg2[%c0_4, %c0_5, %c0_6] : memref<2x8x32xf32, #tpu.memory_space<vmem>>, vector<1x8x32xf32>
    %3 = vector.shape_cast %2 : vector<1x8x32xf32> to vector<8x32xf32>
    %cst = arith.constant dense<0.000000e+00> : vector<8x32xf32>
    %4 = tpu.matmul %3, %0, %cst {dimension_numbers = #tpu.dot_dimension_numbers<[1], [0], [0], [1], [0, 0, 1, 1], [], []>} : vector<8x32xf32>, vector<32x32xf32>, vector<8x32xf32> -> vector<8x32xf32>
    %5 = vector.shape_cast %4 : vector<8x32xf32> to vector<1x8x32xf32>
    %6 = vector.broadcast %5 : vector<1x8x32xf32> to vector<8x8x32xf32>
    %7 = arith.mulf %1, %6 : vector<8x8x32xf32>
    %cst_7 = arith.constant dense<0.000000e+00> : vector<8x8xf32>
    %8 = vector.multi_reduction <add>, %7, %cst_7 [2] : vector<8x8x32xf32> to vector<8x8xf32>
    %9 = tpu.transpose %8, [1, 0] : vector<8x8xf32> -> vector<8x8xf32>
    %cst_8 = arith.constant dense<0xFF800000> : vector<8xf32>
    %10 = vector.multi_reduction <maximumf>, %9, %cst_8 [1] : vector<8x8xf32> to vector<8xf32>
    %11 = vector.shape_cast %10 : vector<8xf32> to vector<8x1xf32>
    %12 = vector.broadcast %11 : vector<8x1xf32> to vector<8x8xf32>
    %13 = arith.subf %9, %12 : vector<8x8xf32>
    %14 = math.exp %13 : vector<8x8xf32>
    %cst_9 = arith.constant dense<0.000000e+00> : vector<8xf32>
    %15 = vector.multi_reduction <add>, %14, %cst_9 [1] : vector<8x8xf32> to vector<8xf32>
    %16 = vector.shape_cast %15 : vector<8xf32> to vector<8x1xf32>
    %17 = tpu.reciprocal %16 {approx = true} : vector<8x1xf32> -> vector<8x1xf32>
    %18 = vector.broadcast %17 : vector<8x1xf32> to vector<8x8xf32>
    %19 = arith.mulf %14, %18 : vector<8x8xf32>
    %c0_10 = arith.constant 0 : index
    %c0_11 = arith.constant 0 : index
    %c0_12 = arith.constant 0 : index
    %20 = vector.load %arg4[%c0_10, %c0_11, %c0_12] : memref<2x8x8xf32, #tpu.memory_space<vmem>>, vector<1x8x8xf32>
    %21 = vector.shape_cast %20 : vector<1x8x8xf32> to vector<8x8xf32>
    %22 = vector.shape_cast %19 : vector<8x8xf32> to vector<1x8x8xf32>
    tpu.vector_store %arg4[%c0_10, %c0_11, %c0_12], %22 {strides = array<i32>} : memref<2x8x8xf32, #tpu.memory_space<vmem>>, vector<1x8x8xf32>,
    %c1 = arith.constant 1 : index
    %c0_13 = arith.constant 0 : index
    %c0_14 = arith.constant 0 : index
    %23 = vector.load %arg2[%c1, %c0_13, %c0_14] : memref<2x8x32xf32, #tpu.memory_space<vmem>>, vector<1x8x32xf32>
    %24 = vector.shape_cast %23 : vector<1x8x32xf32> to vector<8x32xf32>
    %cst_15 = arith.constant dense<0.000000e+00> : vector<8x32xf32>
    %25 = tpu.matmul %24, %0, %cst_15 {dimension_numbers = #tpu.dot_dimension_numbers<[1], [0], [0], [1], [0, 0, 1, 1], [], []>} : vector<8x32xf32>, vector<32x32xf32>, vector<8x32xf32> -> vector<8x32xf32>
    %26 = vector.shape_cast %25 : vector<8x32xf32> to vector<1x8x32xf32>
    %27 = vector.broadcast %26 : vector<1x8x32xf32> to vector<8x8x32xf32>
    %28 = arith.mulf %1, %27 : vector<8x8x32xf32>
    %cst_16 = arith.constant dense<0.000000e+00> : vector<8x8xf32>
    %29 = vector.multi_reduction <add>, %28, %cst_16 [2] : vector<8x8x32xf32> to vector<8x8xf32>
    %30 = tpu.transpose %29, [1, 0] : vector<8x8xf32> -> vector<8x8xf32>
    %cst_17 = arith.constant dense<0xFF800000> : vector<8xf32>
    %31 = vector.multi_reduction <maximumf>, %30, %cst_17 [1] : vector<8x8xf32> to vector<8xf32>
    %32 = vector.shape_cast %31 : vector<8xf32> to vector<8x1xf32>
    %33 = vector.broadcast %32 : vector<8x1xf32> to vector<8x8xf32>
    %34 = arith.subf %30, %33 : vector<8x8xf32>
    %35 = math.exp %34 : vector<8x8xf32>
    %cst_18 = arith.constant dense<0.000000e+00> : vector<8xf32>
    %36 = vector.multi_reduction <add>, %35, %cst_18 [1] : vector<8x8xf32> to vector<8xf32>
    %37 = vector.shape_cast %36 : vector<8xf32> to vector<8x1xf32>
    %38 = tpu.reciprocal %37 {approx = true} : vector<8x1xf32> -> vector<8x1xf32>
    %39 = vector.broadcast %38 : vector<8x1xf32> to vector<8x8xf32>
    %40 = arith.mulf %35, %39 : vector<8x8xf32>
    %c1_19 = arith.constant 1 : index
    %c0_20 = arith.constant 0 : index
    %c0_21 = arith.constant 0 : index
    %41 = vector.load %arg4[%c1_19, %c0_20, %c0_21] : memref<2x8x8xf32, #tpu.memory_space<vmem>>, vector<1x8x8xf32>
    %42 = vector.shape_cast %41 : vector<1x8x8xf32> to vector<8x8xf32>
    %43 = vector.shape_cast %40 : vector<8x8xf32> to vector<1x8x8xf32>
    tpu.vector_store %arg4[%c1_19, %c0_20, %c0_21], %43 {strides = array<i32>} : memref<2x8x8xf32, #tpu.memory_space<vmem>>, vector<1x8x8xf32>,
    return
  }
  func.func @transform_0(%arg0: i32) -> (i32, i32, i32) {
    %c0_i32 = arith.constant 0 : i32
    %c0_i32_0 = arith.constant 0 : i32
    %c0_i32_1 = arith.constant 0 : i32
    return %c0_i32, %arg0, %c0_i32_0 : i32, i32, i32
  }
  func.func @transform_1(%arg0: i32) -> (i32, i32, i32) {
    %c0_i32 = arith.constant 0 : i32
    %c0_i32_0 = arith.constant 0 : i32
    %c0_i32_1 = arith.constant 0 : i32
    return %c0_i32, %arg0, %c0_i32_0 : i32, i32, i32
  }
  func.func @transform_2(%arg0: i32) -> (i32, i32) {
    %c0_i32 = arith.constant 0 : i32
    %c0_i32_0 = arith.constant 0 : i32
    %c0_i32_1 = arith.constant 0 : i32
    return %c0_i32, %c0_i32_0 : i32, i32
  }
  func.func @transform_3(%arg0: i32) -> (i32, i32, i32) {
    %c0_i32 = arith.constant 0 : i32
    %c0_i32_0 = arith.constant 0 : i32
    %c0_i32_1 = arith.constant 0 : i32
    return %c0_i32, %arg0, %c0_i32_0 : i32, i32, i32
  }
}

</mosaic_0001>

<llo_original>
// kernel: tpu_custom_call.1
$region0: #{tpu_custom_call.1}
  #allocation0 [shape = 'u32[]', space=smem, size = 0x4, offset = 0x4, fixed_abs, tag = 'smem constant byte address 0x4 - core index']
  #allocation1 [shape = 'u32[144,128]{1,0:T(1,128)}', space=vmem, size = 0x12000, scoped, tag = 'internal scratch']
  %s0 = inlined_call_operand.hbm [shape: f32[8,8,32], index: 0, kind: input, shape index: {}]
  %s1 = inlined_call_operand.hbm [shape: f32[2,8,32], index: 1, kind: input, shape index: {}]
  %s2 = inlined_call_operand.hbm [shape: f32[32,32], index: 2, kind: input, shape index: {}]
  %s3 = inlined_call_operand.hbm [shape: f32[2,8,8], index: 3, kind: output, shape index: {}]
  %s4 = sld [smem:[#allocation0]]
  $region34: #{tpu_custom_call.1} parent=0
    _
  %s6 = ssub.s32 1, %s4
  %s7 = scalar_select 0, %s6, %s4
  $region1: #{tpu_custom_call.1} parent=0
    #allocation2 [shape = 'u8[32768]{0}', space=vmem, size = 0x8000, scoped, tag = 'input window, operand 0, single buffered']
    #allocation3 [shape = 's32[1]{0}', space=sflag, size = 0x4, scoped, tag = 'scoped memory for tpu_custom_call.1']
    #allocation4 [shape = 's32[1]{0}', space=sflag, size = 0x4, scoped, tag = 'scoped memory for tpu_custom_call.1']
    #allocation5 [shape = 'u8[8192]{0}', space=vmem, size = 0x2000, scoped, tag = 'input window, operand 1, single buffered']
    #allocation6 [shape = 's32[1]{0}', space=sflag, size = 0x4, scoped, tag = 'scoped memory for tpu_custom_call.1']
    #allocation7 [shape = 'u8[16384]{0}', space=vmem, size = 0x4000, scoped, tag = 'input window, operand 2, single buffered']
    #allocation8 [shape = 'u8[8192]{0}', space=vmem, size = 0x2000, scoped, tag = 'output window, operand 0, single buffered']
    %8 = vsyncpa [#allocation3], 0
    %9 = vsyncpa [#allocation6], 0
    %10 = vsyncpa [#allocation4], 0
    // Predicated region
    $region2: #{tpu_custom_call.1} parent=1 // pred_check
      _
    $region3: #{tpu_custom_call.1} parent=1 // pred_check_branch
      %12 = sbr.rel (0) target = $region5
    $region4: #{tpu_custom_call.1} parent=1 // pred_region
      %s14 = ssub.s32 1024, 1024
      %15 = vsyncadd [#allocation3], %s14
      %s16 = sshll.u32 [#allocation2], 4
      %s17 = int_to_ptr.vmem [resolvable:$true] %s16
      %22 = dma.hbm_to_vmem [thread:$0]  %s0, 1024, %s17, [#allocation3], 128, 128, 8
    $region5: #{tpu_custom_call.1} parent=1 // pred_fallthru
      _
    // Predicated region
    $region6: #{tpu_custom_call.1} parent=1 // pred_check
      _
    $region7: #{tpu_custom_call.1} parent=1 // pred_check_branch
      %24 = sbr.rel (0) target = $region9
    $region8: #{tpu_custom_call.1} parent=1 // pred_region
      %s26 = ssub.s32 256, 256
      %27 = vsyncadd [#allocation6], %s26
      %s28 = sshll.u32 [#allocation5], 4
      %s29 = int_to_ptr.vmem [resolvable:$true] %s28
      %34 = dma.hbm_to_vmem [thread:$0]  %s1, 256, %s29, [#allocation6], 128, 128, 8
    $region9: #{tpu_custom_call.1} parent=1 // pred_fallthru
      _
    // Predicated region
    $region10: #{tpu_custom_call.1} parent=1 // pred_check
      _
    $region11: #{tpu_custom_call.1} parent=1 // pred_check_branch
      %36 = sbr.rel (0) target = $region13
    $region12: #{tpu_custom_call.1} parent=1 // pred_region
      %s38 = ssub.s32 512, 512
      %39 = vsyncadd [#allocation6], %s38
      %s40 = sshll.u32 [#allocation7], 4
      %s41 = int_to_ptr.vmem [resolvable:$true] %s40
      %46 = dma.hbm_to_vmem [thread:$0]  %s2, 512, %s41, [#allocation6], 128, 128, 8
    $region13: #{tpu_custom_call.1} parent=1 // pred_fallthru
      _
    // Predicated region
    $region14: #{tpu_custom_call.1} parent=1 // pred_check
      _
    $region15: #{tpu_custom_call.1} parent=1 // pred_check_branch
      %48 = sbr.rel (0) target = $region17
    $region16: #{tpu_custom_call.1} parent=1 // pred_region
      %49 = dma.done [#allocation3], 1024
    $region17: #{tpu_custom_call.1} parent=1 // pred_fallthru
      _
    // Predicated region
    $region18: #{tpu_custom_call.1} parent=1 // pred_check
      _
    $region19: #{tpu_custom_call.1} parent=1 // pred_check_branch
      %51 = sbr.rel (0) target = $region21
    $region20: #{tpu_custom_call.1} parent=1 // pred_region
      %52 = dma.done [#allocation6], 256
    $region21: #{tpu_custom_call.1} parent=1 // pred_fallthru
      _
    // Predicated region
    $region22: #{tpu_custom_call.1} parent=1 // pred_check
      _
    $region23: #{tpu_custom_call.1} parent=1 // pred_check_branch
      %54 = sbr.rel (0) target = $region25
    $region24: #{tpu_custom_call.1} parent=1 // pred_region
      %55 = dma.done [#allocation6], 512
    $region25: #{tpu_custom_call.1} parent=1 // pred_fallthru
      _
    %v56 = vld [vmem:[#allocation7] sm:$0xff]
    %v57 = vld [vmem:[#allocation7 + $0x8] sm:$0xff]
    %v58 = vld [vmem:[#allocation7 + $0x10] sm:$0xff]
    %v59 = vld [vmem:[#allocation7 + $0x18] sm:$0xff]
    %v60 = vld [vmem:[#allocation2] sm:$0xff]
    %v61 = vld [vmem:[#allocation2 + $0x8] sm:$0xff]
    %v62 = vld [vmem:[#allocation2 + $0x10] sm:$0xff]
    %v63 = vld [vmem:[#allocation2 + $0x18] sm:$0xff]
    %v64 = vld [vmem:[#allocation2 + $0x20] sm:$0xff]
    %v65 = vld [vmem:[#allocation2 + $0x28] sm:$0xff]
    %v66 = vld [vmem:[#allocation2 + $0x30] sm:$0xff]
    %v67 = vld [vmem:[#allocation2 + $0x38] sm:$0xff]
    %v68 = vld [vmem:[#allocation5] sm:$0xff]
    %vm69 = vcmask 261120
    %v71 = vsel %vm69, %v68, 0
    %73 = vmatprep.subr.mxu0 0.0
    %74 = vmatpush1.msra.mxu0 %v56
    %75 = vmatprep.subr.mxu0 0.0
    %76 = vmatpush1.msra.mxu0 %v57
    %77 = vmatprep.subr.mxu0 0.0
    %78 = vmatpush1.msra.mxu0 %v58
    %79 = vmatprep.subr.mxu0 0.0
    %80 = vmatpush1.msra.mxu0 %v59
    %81 = vmatprep.subr.mxu0 0.0
    %82 = vmatpush1.msra.mxu0 0.0
    %83 = vmatprep.subr.mxu0 0.0
    %84 = vmatpush1.msra.mxu0 0.0
    %85 = vmatprep.subr.mxu0 0.0
    %86 = vmatpush1.msra.mxu0 0.0
    %87 = vmatprep.subr.mxu0 0.0
    %88 = vmatpush1.msra.mxu0 0.0
    %89 = vmatprep.subr.mxu0 0.0
    %90 = vmatpush1.msra.mxu0 0.0
    %91 = vmatprep.subr.mxu0 0.0
    %92 = vmatpush1.msra.mxu0 0.0
    %93 = vmatprep.subr.mxu0 0.0
    %94 = vmatpush1.msra.mxu0 0.0
    %95 = vmatprep.subr.mxu0 0.0
    %96 = vmatpush1.msra.mxu0 0.0
    %97 = vmatprep.subr.mxu0 0.0
    %98 = vmatpush1.msra.mxu0 0.0
    %99 = vmatprep.subr.mxu0 0.0
    %100 = vmatpush1.msra.mxu0 0.0
    %101 = vmatprep.subr.mxu0 0.0
    %102 = vmatpush1.msra.mxu0 0.0
    %103 = vmatprep.subr.mxu0 0.0
    %104 = vmatpush1.msra.mxu0 0.0
    %105 = vmatprep.subr.mxu0 0.0
    %106 = vmatpush1.msra.mxu0 0.0
    %107 = vmatprep.subr.mxu0 0.0
    %108 = vmatpush1.msra.mxu0 0.0
    %109 = vmatprep.subr.mxu0 0.0
    %110 = vmatpush1.msra.mxu0 0.0
    %111 = vmatprep.subr.mxu0 0.0
    %112 = vmatpush1.msra.mxu0 0.0
    %113 = vmatprep.subr.mxu0 0.0
    %114 = vmatpush1.msra.mxu0 0.0
    %115 = vmatprep.subr.mxu0 0.0
    %116 = vmatpush1.msra.mxu0 0.0
    %117 = vmatprep.subr.mxu0 0.0
    %118 = vmatpush1.msra.mxu0 0.0
    %119 = vmatprep.subr.mxu0 0.0
    %120 = vmatpush1.msra.mxu0 0.0
    %121 = vmatprep.subr.mxu0 0.0
    %122 = vmatpush1.msra.mxu0 0.0
    %123 = vmatprep.subr.mxu0 0.0
    %124 = vmatpush1.msra.mxu0 0.0
    %125 = vmatprep.subr.mxu0 0.0
    %126 = vmatpush1.msra.mxu0 0.0
    %127 = vmatprep.subr.mxu0 0.0
    %128 = vmatpush1.msra.mxu0 0.0
    %129 = vmatprep.subr.mxu0 0.0
    %130 = vmatpush1.msra.mxu0 0.0
    %131 = vmatprep.subr.mxu0 0.0
    %132 = vmatpush1.msra.mxu0 0.0
    %133 = vmatprep.subr.mxu0 0.0
    %134 = vmatpush1.msra.mxu0 0.0
    %135 = vmatprep.subr.mxu0 0.0
    %136 = vmatpush1.msra.mxu0 0.0
    %137 = vmatprep.mubr.f32.mxu0 0.0
    %138 = vmatmul.mubr.f32.gmra.mrb[0].mxu0 %v71
    %v139 = vpop.f32.mrb[0].mxu0
    %v140 = vadd.f32 0.0, %v139
    %v141 = vpop.f32.mrb[0].mxu0
    %142 = vdwg.mxu0
    %v143 = vmul.f32 %v60, %v140
    %v144 = vmul.f32 %v61, %v140
    %v145 = vmul.f32 %v62, %v140
    %v146 = vmul.f32 %v63, %v140
    %v147 = vmul.f32 %v64, %v140
    %v148 = vmul.f32 %v65, %v140
    %v149 = vmul.f32 %v66, %v140
    %v150 = vmul.f32 %v67, %v140
    %v151 = vsel %vm69, %v143, 0.0
    %152 = vadd.xlane.f32.xlu0 %v151
    %v153 = vpop.xlane.xlu0 %152
    %v154 = vsel %vm69, %v144, 0.0
    %155 = vadd.xlane.f32.xlu0 %v154
    %v156 = vpop.xlane.xlu0 %155
    %v157 = vsel %vm69, %v145, 0.0
    %158 = vadd.xlane.f32.xlu0 %v157
    %v159 = vpop.xlane.xlu0 %158
    %v160 = vsel %vm69, %v146, 0.0
    %161 = vadd.xlane.f32.xlu0 %v160
    %v162 = vpop.xlane.xlu0 %161
    %v163 = vsel %vm69, %v147, 0.0
    %164 = vadd.xlane.f32.xlu0 %v163
    %v165 = vpop.xlane.xlu0 %164
    %v166 = vsel %vm69, %v148, 0.0
    %167 = vadd.xlane.f32.xlu0 %v166
    %v168 = vpop.xlane.xlu0 %167
    %v169 = vsel %vm69, %v149, 0.0
    %170 = vadd.xlane.f32.xlu0 %v169
    %v171 = vpop.xlane.xlu0 %170
    %v172 = vsel %vm69, %v150, 0.0
    %173 = vadd.xlane.f32.xlu0 %v172
    %v174 = vpop.xlane.xlu0 %173
    %v183 = vlaneseq
    %v184 = vand.u32 %v183, 127
    %v185 = vlaneseq
    %v186 = vshrl.u32 %v185, 7
    %v187 = vsub.s32 %v184, %v186
    %v188 = vrot.slane %v153, %v187
    %v189 = vlaneseq
    %v190 = vshrl.u32 %v189, 7
    %v191 = vsub.s32 %v184, %v190
    %v192 = vrot.slane %v156, %v191
    %v193 = vlaneseq
    %v194 = vshrl.u32 %v193, 7
    %v195 = vsub.s32 %v184, %v194
    %v196 = vrot.slane %v159, %v195
    %v197 = vlaneseq
    %v198 = vshrl.u32 %v197, 7
    %v199 = vsub.s32 %v184, %v198
    %v200 = vrot.slane %v162, %v199
    %v201 = vlaneseq
    %v202 = vshrl.u32 %v201, 7
    %v203 = vsub.s32 %v184, %v202
    %v204 = vrot.slane %v165, %v203
    %v205 = vlaneseq
    %v206 = vshrl.u32 %v205, 7
    %v207 = vsub.s32 %v184, %v206
    %v208 = vrot.slane %v168, %v207
    %v209 = vlaneseq
    %v210 = vshrl.u32 %v209, 7
    %v211 = vsub.s32 %v184, %v210
    %v212 = vrot.slane %v171, %v211
    %v213 = vlaneseq
    %v214 = vshrl.u32 %v213, 7
    %v215 = vsub.s32 %v184, %v214
    %v216 = vrot.slane %v174, %v215
    %vm217 = vcmask 1041409
    %v218 = vsel %vm217, %v192, %v188
    %vm219 = vcmask 1042434
    %v220 = vsel %vm219, %v196, %v218
    %vm221 = vcmask 1043459
    %v222 = vsel %vm221, %v200, %v220
    %vm223 = vcmask 1044484
    %v224 = vsel %vm223, %v204, %v222
    %vm225 = vcmask 1045509
    %v226 = vsel %vm225, %v208, %v224
    %vm227 = vcmask 1046534
    %v228 = vsel %vm227, %v212, %v226
    %vm229 = vcmask 1047559
    %v230 = vsel %vm229, %v216, %v228
    %232 = vxpose.xlu0.b32.start [1/16] %v230, 128
    %233 = vxpose.xlu0.b32.cont [2/16] 0.0, 128
    %234 = vxpose.xlu0.b32.cont [3/16] 0.0, 128
    %235 = vxpose.xlu0.b32.cont [4/16] 0.0, 128
    %236 = vxpose.xlu0.b32.cont [5/16] 0.0, 128
    %237 = vxpose.xlu0.b32.cont [6/16] 0.0, 128
    %238 = vxpose.xlu0.b32.cont [7/16] 0.0, 128
    %239 = vxpose.xlu0.b32.cont [8/16] 0.0, 128
    %240 = vxpose.xlu0.b32.cont [9/16] 0.0, 128
    %241 = vxpose.xlu0.b32.cont [10/16] 0.0, 128
    %242 = vxpose.xlu0.b32.cont [11/16] 0.0, 128
    %243 = vxpose.xlu0.b32.cont [12/16] 0.0, 128
    %244 = vxpose.xlu0.b32.cont [13/16] 0.0, 128
    %245 = vxpose.xlu0.b32.cont [14/16] 0.0, 128
    %246 = vxpose.xlu0.b32.cont [15/16] 0.0, 128
    %247 = vxpose.xlu0.b32.end [16/16] 0.0, 128
    %v248 = vpop.trf.xlu0
    %v249 = vpop.trf.xlu0
    %v250 = vpop.trf.xlu0
    %v251 = vpop.trf.xlu0
    %v252 = vpop.trf.xlu0
    %v253 = vpop.trf.xlu0
    %v254 = vpop.trf.xlu0
    %v255 = vpop.trf.xlu0
    %v256 = vpop.trf.xlu0
    %v257 = vpop.trf.xlu0
    %v258 = vpop.trf.xlu0
    %v259 = vpop.trf.xlu0
    %v260 = vpop.trf.xlu0
    %v261 = vpop.trf.xlu0
    %v262 = vpop.trf.xlu0
    %v263 = vpop.trf.xlu0
    %vm264 = vcmask 64512
    %v265 = vsel %vm264, %v248, -inf
    %266 = vmax.xlane.f32.xlu0 %v265
    %v267 = vpop.xlane.xlu0 %266
    %v268 = vsub.f32 %v248, %v267
    %v269 = vmul.f32 %v268, 1.442695
    %v270 = vpow.pop %v269
    %v271 = vsel %vm264, %v270, 0.0
    %272 = vadd.xlane.f32.xlu0 %v271
    %v273 = vpop.xlane.xlu0 %272
    %v274 = vrcp.pop %v273
    %v275 = vmul.f32 %v270, %v274
    %276 = vst.msk [vmem:[#allocation8] sm:$0xff] %vm264, %v275
    %s277 = scalar_lea.vmem [#allocation5], 8
    %v278 = vld [vmem:[%s277] sm:$0xff]
    %v280 = vsel %vm69, %v278, 0
    %282 = vmatprep.subr.mxu0 0.0
    %283 = vmatpush1.msra.mxu0 %v56
    %284 = vmatprep.subr.mxu0 0.0
    %285 = vmatpush1.msra.mxu0 %v57
    %286 = vmatprep.subr.mxu0 0.0
    %287 = vmatpush1.msra.mxu0 %v58
    %288 = vmatprep.subr.mxu0 0.0
    %289 = vmatpush1.msra.mxu0 %v59
    %290 = vmatprep.subr.mxu0 0.0
    %291 = vmatpush1.msra.mxu0 0.0
    %292 = vmatprep.subr.mxu0 0.0
    %293 = vmatpush1.msra.mxu0 0.0
    %294 = vmatprep.subr.mxu0 0.0
    %295 = vmatpush1.msra.mxu0 0.0
    %296 = vmatprep.subr.mxu0 0.0
    %297 = vmatpush1.msra.mxu0 0.0
    %298 = vmatprep.subr.mxu0 0.0
    %299 = vmatpush1.msra.mxu0 0.0
    %300 = vmatprep.subr.mxu0 0.0
    %301 = vmatpush1.msra.mxu0 0.0
    %302 = vmatprep.subr.mxu0 0.0
    %303 = vmatpush1.msra.mxu0 0.0
    %304 = vmatprep.subr.mxu0 0.0
    %305 = vmatpush1.msra.mxu0 0.0
    %306 = vmatprep.subr.mxu0 0.0
    %307 = vmatpush1.msra.mxu0 0.0
    %308 = vmatprep.subr.mxu0 0.0
    %309 = vmatpush1.msra.mxu0 0.0
    %310 = vmatprep.subr.mxu0 0.0
    %311 = vmatpush1.msra.mxu0 0.0
    %312 = vmatprep.subr.mxu0 0.0
    %313 = vmatpush1.msra.mxu0 0.0
    %314 = vmatprep.subr.mxu0 0.0
    %315 = vmatpush1.msra.mxu0 0.0
    %316 = vmatprep.subr.mxu0 0.0
    %317 = vmatpush1.msra.mxu0 0.0
    %318 = vmatprep.subr.mxu0 0.0
    %319 = vmatpush1.msra.mxu0 0.0
    %320 = vmatprep.subr.mxu0 0.0
    %321 = vmatpush1.msra.mxu0 0.0
    %322 = vmatprep.subr.mxu0 0.0
    %323 = vmatpush1.msra.mxu0 0.0
    %324 = vmatprep.subr.mxu0 0.0
    %325 = vmatpush1.msra.mxu0 0.0
    %326 = vmatprep.subr.mxu0 0.0
    %327 = vmatpush1.msra.mxu0 0.0
    %328 = vmatprep.subr.mxu0 0.0
    %329 = vmatpush1.msra.mxu0 0.0
    %330 = vmatprep.subr.mxu0 0.0
    %331 = vmatpush1.msra.mxu0 0.0
    %332 = vmatprep.subr.mxu0 0.0
    %333 = vmatpush1.msra.mxu0 0.0
    %334 = vmatprep.subr.mxu0 0.0
    %335 = vmatpush1.msra.mxu0 0.0
    %336 = vmatprep.subr.mxu0 0.0
    %337 = vmatpush1.msra.mxu0 0.0
    %338 = vmatprep.subr.mxu0 0.0
    %339 = vmatpush1.msra.mxu0 0.0
    %340 = vmatprep.subr.mxu0 0.0
    %341 = vmatpush1.msra.mxu0 0.0
    %342 = vmatprep.subr.mxu0 0.0
    %343 = vmatpush1.msra.mxu0 0.0
    %344 = vmatprep.subr.mxu0 0.0
    %345 = vmatpush1.msra.mxu0 0.0
    %346 = vmatprep.mubr.f32.mxu0 0.0
    %347 = vmatmul.mubr.f32.gmra.mrb[0].mxu0 %v280
    %v348 = vpop.f32.mrb[0].mxu0
    %v349 = vadd.f32 0.0, %v348
    %v350 = vpop.f32.mrb[0].mxu0
    %351 = vdwg.mxu0
    %v352 = vmul.f32 %v60, %v349
    %v353 = vmul.f32 %v61, %v349
    %v354 = vmul.f32 %v62, %v349
    %v355 = vmul.f32 %v63, %v349
    %v356 = vmul.f32 %v64, %v349
    %v357 = vmul.f32 %v65, %v349
    %v358 = vmul.f32 %v66, %v349
    %v359 = vmul.f32 %v67, %v349
    %v360 = vsel %vm69, %v352, 0.0
    %361 = vadd.xlane.f32.xlu0 %v360
    %v362 = vpop.xlane.xlu0 %361
    %v363 = vsel %vm69, %v353, 0.0
    %364 = vadd.xlane.f32.xlu0 %v363
    %v365 = vpop.xlane.xlu0 %364
    %v366 = vsel %vm69, %v354, 0.0
    %367 = vadd.xlane.f32.xlu0 %v366
    %v368 = vpop.xlane.xlu0 %367
    %v369 = vsel %vm69, %v355, 0.0
    %370 = vadd.xlane.f32.xlu0 %v369
    %v371 = vpop.xlane.xlu0 %370
    %v372 = vsel %vm69, %v356, 0.0
    %373 = vadd.xlane.f32.xlu0 %v372
    %v374 = vpop.xlane.xlu0 %373
    %v375 = vsel %vm69, %v357, 0.0
    %376 = vadd.xlane.f32.xlu0 %v375
    %v377 = vpop.xlane.xlu0 %376
    %v378 = vsel %vm69, %v358, 0.0
    %379 = vadd.xlane.f32.xlu0 %v378
    %v380 = vpop.xlane.xlu0 %379
    %v381 = vsel %vm69, %v359, 0.0
    %382 = vadd.xlane.f32.xlu0 %v381
    %v383 = vpop.xlane.xlu0 %382
    %v392 = vlaneseq
    %v393 = vshrl.u32 %v392, 7
    %v394 = vsub.s32 %v184, %v393
    %v395 = vrot.slane %v362, %v394
    %v396 = vlaneseq
    %v397 = vshrl.u32 %v396, 7
    %v398 = vsub.s32 %v184, %v397
    %v399 = vrot.slane %v365, %v398
    %v400 = vlaneseq
    %v401 = vshrl.u32 %v400, 7
    %v402 = vsub.s32 %v184, %v401
    %v403 = vrot.slane %v368, %v402
    %v404 = vlaneseq
    %v405 = vshrl.u32 %v404, 7
    %v406 = vsub.s32 %v184, %v405
    %v407 = vrot.slane %v371, %v406
    %v408 = vlaneseq
    %v409 = vshrl.u32 %v408, 7
    %v410 = vsub.s32 %v184, %v409
    %v411 = vrot.slane %v374, %v410
    %v412 = vlaneseq
    %v413 = vshrl.u32 %v412, 7
    %v414 = vsub.s32 %v184, %v413
    %v415 = vrot.slane %v377, %v414
    %v416 = vlaneseq
    %v417 = vshrl.u32 %v416, 7
    %v418 = vsub.s32 %v184, %v417
    %v419 = vrot.slane %v380, %v418
    %v420 = vlaneseq
    %v421 = vshrl.u32 %v420, 7
    %v422 = vsub.s32 %v184, %v421
    %v423 = vrot.slane %v383, %v422
    %v424 = vsel %vm217, %v399, %v395
    %v425 = vsel %vm219, %v403, %v424
    %v426 = vsel %vm221, %v407, %v425
    %v427 = vsel %vm223, %v411, %v426
    %v428 = vsel %vm225, %v415, %v427
    %v429 = vsel %vm227, %v419, %v428
    %v430 = vsel %vm229, %v423, %v429
    %432 = vxpose.xlu0.b32.start [1/16] %v430, 128
    %433 = vxpose.xlu0.b32.cont [2/16] 0.0, 128
    %434 = vxpose.xlu0.b32.cont [3/16] 0.0, 128
    %435 = vxpose.xlu0.b32.cont [4/16] 0.0, 128
    %436 = vxpose.xlu0.b32.cont [5/16] 0.0, 128
    %437 = vxpose.xlu0.b32.cont [6/16] 0.0, 128
    %438 = vxpose.xlu0.b32.cont [7/16] 0.0, 128
    %439 = vxpose.xlu0.b32.cont [8/16] 0.0, 128
    %440 = vxpose.xlu0.b32.cont [9/16] 0.0, 128
    %441 = vxpose.xlu0.b32.cont [10/16] 0.0, 128
    %442 = vxpose.xlu0.b32.cont [11/16] 0.0, 128
    %443 = vxpose.xlu0.b32.cont [12/16] 0.0, 128
    %444 = vxpose.xlu0.b32.cont [13/16] 0.0, 128
    %445 = vxpose.xlu0.b32.cont [14/16] 0.0, 128
    %446 = vxpose.xlu0.b32.cont [15/16] 0.0, 128
    %447 = vxpose.xlu0.b32.end [16/16] 0.0, 128
    %v448 = vpop.trf.xlu0
    %v449 = vpop.trf.xlu0
    %v450 = vpop.trf.xlu0
    %v451 = vpop.trf.xlu0
    %v452 = vpop.trf.xlu0
    %v453 = vpop.trf.xlu0
    %v454 = vpop.trf.xlu0
    %v455 = vpop.trf.xlu0
    %v456 = vpop.trf.xlu0
    %v457 = vpop.trf.xlu0
    %v458 = vpop.trf.xlu0
    %v459 = vpop.trf.xlu0
    %v460 = vpop.trf.xlu0
    %v461 = vpop.trf.xlu0
    %v462 = vpop.trf.xlu0
    %v463 = vpop.trf.xlu0
    %v464 = vsel %vm264, %v448, -inf
    %465 = vmax.xlane.f32.xlu0 %v464
    %v466 = vpop.xlane.xlu0 %465
    %v467 = vsub.f32 %v448, %v466
    %v468 = vmul.f32 %v467, 1.442695
    %v469 = vpow.pop %v468
    %v470 = vsel %vm264, %v469, 0.0
    %471 = vadd.xlane.f32.xlu0 %v470
    %v472 = vpop.xlane.xlu0 %471
    %v473 = vrcp.pop %v472
    %v474 = vmul.f32 %v469, %v473
    %s475 = scalar_lea.vmem [#allocation8], 8
    %476 = vst.msk [vmem:[%s475] sm:$0xff] %vm264, %v474
    // Predicated region
    $region26: #{tpu_custom_call.1} parent=1 // pred_check
      _
    $region27: #{tpu_custom_call.1} parent=1 // pred_check_branch
      %478 = sbr.rel (0) target = $region29
    $region28: #{tpu_custom_call.1} parent=1 // pred_region
      %s480 = ssub.s32 256, 256
      %481 = vsyncadd [#allocation4], %s480
      %s482 = sshll.u32 [#allocation8], 4
      %s483 = int_to_ptr.vmem [resolvable:$true] %s482
      %488 = dma.vmem_to_hbm [thread:$0]  %s483, 256, %s3, [#allocation4], 128, 128, 8
    $region29: #{tpu_custom_call.1} parent=1 // pred_fallthru
      _
    // Predicated region
    $region30: #{tpu_custom_call.1} parent=1 // pred_check
      _
    $region31: #{tpu_custom_call.1} parent=1 // pred_check_branch
      %490 = sbr.rel (0) target = $region33
    $region32: #{tpu_custom_call.1} parent=1 // pred_region
      %491 = dma.done [#allocation4], 256
    $region33: #{tpu_custom_call.1} parent=1 // pred_fallthru
      _
    %492 = vsyncpa [#allocation3], 1
    %493 = vsyncpa [#allocation6], 1
    %494 = vsyncpa [#allocation4], 1

</llo_original>
